<compile_context>
chip_gen: v6e
topology: v6e:2x2x1
jax: 0.10.0
libtpu: 0.0.40
codegen_flags: <defaults>
</compile_context>

<pallas_src>
import functools

import jax
import jax.numpy as jnp
from jax.experimental import pallas as pl
from jax.experimental.pallas import tpu as pltpu


# ---------------------------------------------------------------------------
# Pallas kernels (one grid step == one graph of the batch)
# ---------------------------------------------------------------------------
def _gcn_eval_kernel(a_ref, x_ref, w1_ref, b1_ref, w2_ref, b2_ref, o_ref):
    """Fused 2-layer GCN forward, eval mode (F.dropout == identity).

    out = A_hat @ relu(A_hat @ (X @ W1) + b1) @ W2 + b2
    bf16 MXU operands, f32 accumulation; bias add / relu in f32 on the VPU.
    """
    a = a_ref[...]                                                   # bf16 [N, N]
    h = jnp.dot(x_ref[...], w1_ref[...],
                preferred_element_type=jnp.float32)                  # [N, H] f32
    h = jnp.dot(a, h.astype(jnp.bfloat16),
                preferred_element_type=jnp.float32) + b1_ref[...]
    h = jnp.maximum(h, 0.0)                                          # relu (f32)
    h = jnp.dot(h.astype(jnp.bfloat16), w2_ref[...],
                preferred_element_type=jnp.float32)                  # [N, C] f32
    o_ref[...] = jnp.dot(a, h.astype(jnp.bfloat16),
                         preferred_element_type=jnp.float32) + b2_ref[...]


def _gcn_train_kernel(a_ref, x_ref, bits_ref, w1_ref, b1_ref, w2_ref, b2_ref,
                      o_ref, *, threshold, scale):
    """Eval kernel + inverted dropout between the two GCN layers.

    keep = bits >= threshold (pure uint32 VALU compare, keep-prob = 1 - p);
    kept activations are scaled by 1/(1-p). The random bits are generated
    host-side with jax.random.bits and streamed in as an operand so the kernel
    also lowers in interpret mode (pltpu.prng_seed has no CPU lowering).
    # TODO(synk): dropout mask is deterministic per key but not bit-identical
    # to torch F.dropout's RNG stream.
    """
    a = a_ref[...]
    h = jnp.dot(x_ref[...], w1_ref[...], preferred_element_type=jnp.float32)
    h = jnp.dot(a, h.astype(jnp.bfloat16),
                preferred_element_type=jnp.float32) + b1_ref[...]
    h = jnp.maximum(h, 0.0)

    keep = bits_ref[...] >= jnp.uint32(threshold)       # integer threshold
    h = jnp.where(keep, h * jnp.float32(scale), jnp.float32(0.0))

    h = jnp.dot(h.astype(jnp.bfloat16), w2_ref[...],
                preferred_element_type=jnp.float32)
    o_ref[...] = jnp.dot(a, h.astype(jnp.bfloat16),
                         preferred_element_type=jnp.float32) + b2_ref[...]


# ---------------------------------------------------------------------------
# Wrapper
# ---------------------------------------------------------------------------
def gcn_forward(x, a_hat, w1, b1, w2, b2, *, p=0.5, training=False, rng=None):
    """Fused 2-layer GCN forward as a single pallas_call.

    x: [N, F] or [B, N, F]; a_hat: [N, N] or [B, N, N]. One grid step per
    graph; each graph uses whole-array VMEM blocks (block_shape == full array
    on the last two dims, so the (8,128) rule is satisfied).
    """
    squeeze = x.ndim == 2
    if squeeze:
        x = x[None]
        a_hat = a_hat[None]
    B, N, F_in = x.shape
    hidden = w1.shape[1]
    num_classes = w2.shape[1]

    # Whole-graph blocks: refuse sizes that would blow the default scoped VMEM.
    per_step_bytes = 2 * (N * N * 2 + N * F_in * 2 + N * hidden * 4)
    if per_step_bytes > 12 * 1024 * 1024:
        # TODO(synk): for large graphs, row-tile A_hat with a grid/index_map
        # (split the two propagations) instead of whole-array blocks; dense
        # [N, N] blocks OOM scoped VMEM around N ~ 2k.
        raise NotImplementedError("graph too large for whole-block GCN kernel")

    # bf16 MXU operands, f32 biases / accumulation.
    a_bf = a_hat.astype(jnp.bfloat16)
    x_bf = x.astype(jnp.bfloat16)
    w1_bf = w1.astype(jnp.bfloat16)
    w2_bf = w2.astype(jnp.bfloat16)
    b1_f = b1.reshape(1, hidden).astype(jnp.float32)
    b2_f = b2.reshape(1, num_classes).astype(jnp.float32)

    def per_graph(last2):
        return pl.BlockSpec((None,) + last2, lambda b: (b, 0, 0))

    def shared(shape):
        return pl.BlockSpec(shape, lambda b: (0, 0))

    out_spec = pl.BlockSpec((None, N, num_classes), lambda b: (b, 0, 0))
    out_shape = jax.ShapeDtypeStruct((B, N, num_classes), jnp.float32)
    params = pltpu.CompilerParams(dimension_semantics=("parallel",))

    if training and p > 0.0:
        if rng is None:
            rng = jax.random.PRNGKey(0)
        bits = jax.random.bits(rng, (B, N, hidden), dtype=jnp.uint32)
        threshold = min(int(round(p * 2.0 ** 32)), 2 ** 32 - 1)
        kernel = functools.partial(_gcn_train_kernel, threshold=threshold,
                                   scale=1.0 / (1.0 - p))
        out = pl.pallas_call(
            kernel,
            out_shape=out_shape,
            grid=(B,),
            in_specs=[per_graph((N, N)), per_graph((N, F_in)),
                      per_graph((N, hidden)),
                      shared((F_in, hidden)), shared((1, hidden)),
                      shared((hidden, num_classes)), shared((1, num_classes))],
            out_specs=out_spec,
            compiler_params=params,
        )(a_bf, x_bf, bits, w1_bf, b1_f, w2_bf, b2_f)
    else:
        out = pl.pallas_call(
            _gcn_eval_kernel,
            out_shape=out_shape,
            grid=(B,),
            in_specs=[per_graph((N, N)), per_graph((N, F_in)),
                      shared((F_in, hidden)), shared((1, hidden)),
                      shared((hidden, num_classes)), shared((1, num_classes))],
            out_specs=out_spec,
            compiler_params=params,
        )(a_bf, x_bf, w1_bf, b1_f, w2_bf, b2_f)

    return out[0] if squeeze else out


# ---------------------------------------------------------------------------
# Glue: GCNConv's normalized dense adjacency from edge_index
# ---------------------------------------------------------------------------
def build_a_hat(edge_index, num_nodes):
    """A_hat = D^-1/2 (A + I_remaining) D^-1/2, A[i, j] = #edges j -> i.

    Matches torch_geometric gcn_norm defaults: add_remaining_self_loops (only
    nodes without an existing self loop get the extra +1), edge_weight=None.
    """
    src = edge_index[0]
    dst = edge_index[1]
    a = jnp.zeros((num_nodes, num_nodes), jnp.float32).at[dst, src].add(1.0)
    diag = jnp.diagonal(a)
    a = a + jnp.diag(jnp.where(diag == 0.0, 1.0, 0.0))   # remaining self loops
    deg = a.sum(axis=1)
    d_inv_sqrt = jnp.where(deg > 0, jax.lax.rsqrt(deg), 0.0)
    return d_inv_sqrt[:, None] * a * d_inv_sqrt[None, :]


# ---------------------------------------------------------------------------
# Pure-JAX reference (mirrors the kernel's bf16/f32 mixed precision)
# ---------------------------------------------------------------------------
def ref_forward(a, x, w1, b1, w2, b2, keep=None, scale=1.0):
    ab = a.astype(jnp.bfloat16)
    xb = x.astype(jnp.bfloat16)
    w1b = w1.astype(jnp.bfloat16)
    w2b = w2.astype(jnp.bfloat16)
    h = jnp.dot(xb, w1b, preferred_element_type=jnp.float32)
    h = jnp.dot(ab, h.astype(jnp.bfloat16), preferred_element_type=jnp.float32) + b1
    h = jnp.maximum(h, 0.0)
    if keep is not None:
        h = jnp.where(keep, h * jnp.float32(scale), jnp.float32(0.0))
    h = jnp.dot(h.astype(jnp.bfloat16), w2b, preferred_element_type=jnp.float32)
    return jnp.dot(ab, h.astype(jnp.bfloat16),
                   preferred_element_type=jnp.float32) + b2


# ---------------------------------------------------------------------------
# Main
# ---------------------------------------------------------------------------
if __name__ == "__main__":
    N, F_IN, HIDDEN, C, E, P_DROP = 16, 16, 32, 4, 40, 0.5

    key = jax.random.PRNGKey(0)
    kx, ke, kw1, kw2, kd = jax.random.split(key, 5)

    def glorot(k, shape):
        limit = (6.0 / (shape[0] + shape[1])) ** 0.5
        return jax.random.uniform(k, shape, jnp.float32, -limit, limit)

    w1 = glorot(kw1, (F_IN, HIDDEN))
    b1 = jnp.zeros((1, HIDDEN), jnp.float32)
    w2 = glorot(kw2, (HIDDEN, C))
    b2 = jnp.zeros((1, C), jnp.float32)

    # two small graphs: graph 0 reproduces the single-graph module forward,
    # the batch of two exercises the parallel grid path.
    kx0, kx1 = jax.random.split(kx)
    ke0, ke1 = jax.random.split(ke)
    x = jnp.stack([jax.random.normal(kx0, (N, F_IN), jnp.float32),
                   jax.random.normal(kx1, (N, F_IN), jnp.float32)])
    edges = [jax.random.randint(ke0, (2, E), 0, N, dtype=jnp.int32),
             jax.random.randint(ke1, (2, E), 0, N, dtype=jnp.int32)]
    a_hat = jnp.stack([build_a_hat(e, N) for e in edges])

    # --- single-graph, eval mode (matches the PyTorch module) ---------------
    out = jax.block_until_ready(
        gcn_forward(x[0], a_hat[0], w1, b1, w2, b2, p=P_DROP, training=False))
    ref = ref_forward(a_hat[0], x[0], w1, b1, w2, b2)
    assert out.shape == (N, C)
    assert jnp.allclose(out, ref, atol=1e-2, rtol=1e-2), "eval mismatch"

    # --- batched, training mode (inverted dropout) over a parallel grid -----
    out_tr = jax.block_until_ready(
        gcn_forward(x, a_hat, w1, b1, w2, b2, p=P_DROP, training=True, rng=kd))
    bits = jax.random.bits(kd, (2, N, HIDDEN), dtype=jnp.uint32)
    thresh = min(int(round(P_DROP * 2.0 ** 32)), 2 ** 32 - 1)
    keep = bits >= jnp.uint32(thresh)
    ref_tr = jnp.stack([
        ref_forward(a_hat[i], x[i], w1, b1, w2, b2,
                    keep=keep[i], scale=1.0 / (1.0 - P_DROP))
        for i in range(2)])
    assert out_tr.shape == (2, N, C)
    assert jnp.allclose(out_tr, ref_tr, atol=1e-2, rtol=1e-2), "train mismatch"

    print("KERNEL_OK")
</pallas_src>

<mosaic_0001>
module attributes {stable_mosaic.version = 11 : i64} {
  func.func @_gcn_eval_kernel(%arg0: i32, %arg1: memref<1x16x16xbf16, #tpu.memory_space<vmem>>, %arg2: memref<1x16x16xbf16, #tpu.memory_space<vmem>>, %arg3: memref<16x32xbf16, #tpu.memory_space<vmem>>, %arg4: memref<1x32xf32, #tpu.memory_space<vmem>>, %arg5: memref<32x4xbf16, #tpu.memory_space<vmem>>, %arg6: memref<1x4xf32, #tpu.memory_space<vmem>>, %arg7: memref<1x16x4xf32, #tpu.memory_space<vmem>>) attributes {dimension_semantics = [#tpu.dimension_semantics<parallel>], iteration_bounds = array<i64: 1>, scalar_prefetch = 0 : i64, scratch_operands = 0 : i64, tpu.core_type = #tpu.core_type<tc>, window_params = [{transform_indices = @transform_0, window_bounds = array<i64: 1, 16, 16>}, {transform_indices = @transform_1, window_bounds = array<i64: 1, 16, 16>}, {pipeline_mode = #tpu.pipeline_mode<synchronous>, transform_indices = @transform_2, window_bounds = array<i64: 16, 32>}, {pipeline_mode = #tpu.pipeline_mode<synchronous>, transform_indices = @transform_3, window_bounds = array<i64: 1, 32>}, {pipeline_mode = #tpu.pipeline_mode<synchronous>, transform_indices = @transform_4, window_bounds = array<i64: 32, 4>}, {pipeline_mode = #tpu.pipeline_mode<synchronous>, transform_indices = @transform_5, window_bounds = array<i64: 1, 4>}, {transform_indices = @transform_6, window_bounds = array<i64: 1, 16, 4>}]} {
    %c0 = arith.constant 0 : index
    %c0_0 = arith.constant 0 : index
    %c0_1 = arith.constant 0 : index
    %0 = vector.load %arg1[%c0, %c0_0, %c0_1] : memref<1x16x16xbf16, #tpu.memory_space<vmem>>, vector<1x16x16xbf16>
    %1 = vector.shape_cast %0 : vector<1x16x16xbf16> to vector<16x16xbf16>
    %c0_2 = arith.constant 0 : index
    %c0_3 = arith.constant 0 : index
    %c0_4 = arith.constant 0 : index
    %2 = vector.load %arg2[%c0_2, %c0_3, %c0_4] : memref<1x16x16xbf16, #tpu.memory_space<vmem>>, vector<1x16x16xbf16>
    %3 = vector.shape_cast %2 : vector<1x16x16xbf16> to vector<16x16xbf16>
    %c0_5 = arith.constant 0 : index
    %c0_6 = arith.constant 0 : index
    %4 = vector.load %arg3[%c0_5, %c0_6] : memref<16x32xbf16, #tpu.memory_space<vmem>>, vector<16x32xbf16>
    %cst = arith.constant dense<0.000000e+00> : vector<16x32xf32>
    %5 = tpu.matmul %3, %4, %cst {dimension_numbers = #tpu.dot_dimension_numbers<[1], [0], [0], [1], [0, 0, 1, 1], [], []>} : vector<16x16xbf16>, vector<16x32xbf16>, vector<16x32xf32> -> vector<16x32xf32>
    %6 = arith.truncf %5 : vector<16x32xf32> to vector<16x32xbf16>
    %cst_7 = arith.constant dense<0.000000e+00> : vector<16x32xf32>
    %7 = tpu.matmul %1, %6, %cst_7 {dimension_numbers = #tpu.dot_dimension_numbers<[1], [0], [0], [1], [0, 0, 1, 1], [], []>} : vector<16x16xbf16>, vector<16x32xbf16>, vector<16x32xf32> -> vector<16x32xf32>
    %c0_8 = arith.constant 0 : index
    %c0_9 = arith.constant 0 : index
    %8 = vector.load %arg4[%c0_8, %c0_9] : memref<1x32xf32, #tpu.memory_space<vmem>>, vector<1x32xf32>
    %9 = vector.broadcast %8 : vector<1x32xf32> to vector<16x32xf32>
    %10 = arith.addf %7, %9 : vector<16x32xf32>
    %cst_10 = arith.constant 0.000000e+00 : f32
    %11 = vector.broadcast %cst_10 : f32 to vector<16x32xf32>
    %12 = arith.maximumf %10, %11 : vector<16x32xf32>
    %13 = arith.truncf %12 : vector<16x32xf32> to vector<16x32xbf16>
    %c0_11 = arith.constant 0 : index
    %c0_12 = arith.constant 0 : index
    %14 = vector.load %arg5[%c0_11, %c0_12] : memref<32x4xbf16, #tpu.memory_space<vmem>>, vector<32x4xbf16>
    %cst_13 = arith.constant dense<0.000000e+00> : vector<16x4xf32>
    %15 = tpu.matmul %13, %14, %cst_13 {dimension_numbers = #tpu.dot_dimension_numbers<[1], [0], [0], [1], [0, 0, 1, 1], [], []>} : vector<16x32xbf16>, vector<32x4xbf16>, vector<16x4xf32> -> vector<16x4xf32>
    %16 = arith.truncf %15 : vector<16x4xf32> to vector<16x4xbf16>
    %cst_14 = arith.constant dense<0.000000e+00> : vector<16x4xf32>
    %17 = tpu.matmul %1, %16, %cst_14 {dimension_numbers = #tpu.dot_dimension_numbers<[1], [0], [0], [1], [0, 0, 1, 1], [], []>} : vector<16x16xbf16>, vector<16x4xbf16>, vector<16x4xf32> -> vector<16x4xf32>
    %c0_15 = arith.constant 0 : index
    %c0_16 = arith.constant 0 : index
    %18 = vector.load %arg6[%c0_15, %c0_16] : memref<1x4xf32, #tpu.memory_space<vmem>>, vector<1x4xf32>
    %19 = vector.broadcast %18 : vector<1x4xf32> to vector<16x4xf32>
    %20 = arith.addf %17, %19 : vector<16x4xf32>
    %c0_17 = arith.constant 0 : index
    %c0_18 = arith.constant 0 : index
    %c0_19 = arith.constant 0 : index
    %21 = vector.load %arg7[%c0_17, %c0_18, %c0_19] : memref<1x16x4xf32, #tpu.memory_space<vmem>>, vector<1x16x4xf32>
    %22 = vector.shape_cast %21 : vector<1x16x4xf32> to vector<16x4xf32>
    %23 = vector.shape_cast %20 : vector<16x4xf32> to vector<1x16x4xf32>
    tpu.vector_store %arg7[%c0_17, %c0_18, %c0_19], %23 {strides = array<i32>} : memref<1x16x4xf32, #tpu.memory_space<vmem>>, vector<1x16x4xf32>,
    return
  }
  func.func @transform_0(%arg0: i32) -> (i32, i32, i32) {
    %c0_i32 = arith.constant 0 : i32
    %c0_i32_0 = arith.constant 0 : i32
    %c0_i32_1 = arith.constant 0 : i32
    return %arg0, %c0_i32, %c0_i32_0 : i32, i32, i32
  }
  func.func @transform_1(%arg0: i32) -> (i32, i32, i32) {
    %c0_i32 = arith.constant 0 : i32
    %c0_i32_0 = arith.constant 0 : i32
    %c0_i32_1 = arith.constant 0 : i32
    return %arg0, %c0_i32, %c0_i32_0 : i32, i32, i32
  }
  func.func @transform_2(%arg0: i32) -> (i32, i32) {
    %c0_i32 = arith.constant 0 : i32
    %c0_i32_0 = arith.constant 0 : i32
    %c0_i32_1 = arith.constant 0 : i32
    return %c0_i32, %c0_i32_0 : i32, i32
  }
  func.func @transform_3(%arg0: i32) -> (i32, i32) {
    %c0_i32 = arith.constant 0 : i32
    %c0_i32_0 = arith.constant 0 : i32
    %c0_i32_1 = arith.constant 0 : i32
    return %c0_i32, %c0_i32_0 : i32, i32
  }
  func.func @transform_4(%arg0: i32) -> (i32, i32) {
    %c0_i32 = arith.constant 0 : i32
    %c0_i32_0 = arith.constant 0 : i32
    %c0_i32_1 = arith.constant 0 : i32
    return %c0_i32, %c0_i32_0 : i32, i32
  }
  func.func @transform_5(%arg0: i32) -> (i32, i32) {
    %c0_i32 = arith.constant 0 : i32
    %c0_i32_0 = arith.constant 0 : i32
    %c0_i32_1 = arith.constant 0 : i32
    return %c0_i32, %c0_i32_0 : i32, i32
  }
  func.func @transform_6(%arg0: i32) -> (i32, i32, i32) {
    %c0_i32 = arith.constant 0 : i32
    %c0_i32_0 = arith.constant 0 : i32
    %c0_i32_1 = arith.constant 0 : i32
    return %arg0, %c0_i32, %c0_i32_0 : i32, i32, i32
  }
}

</mosaic_0001>

<llo_original>
// kernel: tpu_custom_call.1
$region0: #{tpu_custom_call.1}
  #allocation0 [shape = 'u32[]', space=smem, size = 0x4, offset = 0x4, fixed_abs, tag = 'smem constant byte address 0x4 - core index']
  #allocation1 [shape = 'u32[144,128]{1,0:T(1,128)}', space=vmem, size = 0x12000, scoped, tag = 'internal scratch']
  %s0 = inlined_call_operand.vmem [shape: bf16[1,16,16], index: 0, kind: input, shape index: {}]
  %s1 = inlined_call_operand.vmem [shape: bf16[1,16,16], index: 1, kind: input, shape index: {}]
  %s2 = inlined_call_operand.hbm [shape: bf16[16,32], index: 2, kind: input, shape index: {}]
  %s3 = inlined_call_operand.vmem [shape: f32[1,32], index: 3, kind: input, shape index: {}]
  %s4 = inlined_call_operand.vmem [shape: bf16[32,4], index: 4, kind: input, shape index: {}]
  %s5 = inlined_call_operand.vmem [shape: f32[1,4], index: 5, kind: input, shape index: {}]
  %s6 = inlined_call_operand.vmem [shape: f32[1,16,4], index: 6, kind: output, shape index: {}]
  %s7 = sld [smem:[#allocation0]]
  $region38: #{tpu_custom_call.1} parent=0
    _
  %s9 = ssub.s32 1, %s7
  %s10 = scalar_select 0, %s9, %s7
  $region1: #{tpu_custom_call.1} parent=0
    #allocation2 [shape = 'u8[4096]{0}', space=vmem, size = 0x1000, scoped, tag = 'input window, operand 2, single buffered']
    #allocation3 [shape = 's32[1]{0}', space=sflag, size = 0x4, scoped, tag = 'scoped memory for tpu_custom_call.1']
    %11 = vsyncpa [#allocation3], 0
    // Predicated region
    $region2: #{tpu_custom_call.1} parent=1 // pred_check
      _
    $region3: #{tpu_custom_call.1} parent=1 // pred_check_branch
      %13 = sbr.rel (0) target = $region5
    $region4: #{tpu_custom_call.1} parent=1 // pred_region
      _
    $region5: #{tpu_custom_call.1} parent=1 // pred_fallthru
      _
    // Predicated region
    $region6: #{tpu_custom_call.1} parent=1 // pred_check
      _
    $region7: #{tpu_custom_call.1} parent=1 // pred_check_branch
      %15 = sbr.rel (0) target = $region9
    $region8: #{tpu_custom_call.1} parent=1 // pred_region
      _
    $region9: #{tpu_custom_call.1} parent=1 // pred_fallthru
      _
    // Predicated region
    $region10: #{tpu_custom_call.1} parent=1 // pred_check
      _
    $region11: #{tpu_custom_call.1} parent=1 // pred_check_branch
      %17 = sbr.rel (0) target = $region13
    $region12: #{tpu_custom_call.1} parent=1 // pred_region
      %s19 = ssub.s32 128, 128
      %20 = vsyncadd [#allocation3], %s19
      %s21 = sshll.u32 [#allocation2], 4
      %s22 = int_to_ptr.vmem [resolvable:$true] %s21
      %27 = dma.hbm_to_vmem [thread:$0]  %s2, 128, %s22, [#allocation3], 64, 64, 4
    $region13: #{tpu_custom_call.1} parent=1 // pred_fallthru
      _
    // Predicated region
    $region14: #{tpu_custom_call.1} parent=1 // pred_check
      _
    $region15: #{tpu_custom_call.1} parent=1 // pred_check_branch
      %29 = sbr.rel (0) target = $region17
    $region16: #{tpu_custom_call.1} parent=1 // pred_region
      _
    $region17: #{tpu_custom_call.1} parent=1 // pred_fallthru
      _
    // Predicated region
    $region18: #{tpu_custom_call.1} parent=1 // pred_check
      _
    $region19: #{tpu_custom_call.1} parent=1 // pred_check_branch
      %31 = sbr.rel (0) target = $region21
    $region20: #{tpu_custom_call.1} parent=1 // pred_region
      _
    $region21: #{tpu_custom_call.1} parent=1 // pred_fallthru
      _
    // Predicated region
    $region22: #{tpu_custom_call.1} parent=1 // pred_check
      _
    $region23: #{tpu_custom_call.1} parent=1 // pred_check_branch
      %33 = sbr.rel (0) target = $region25
    $region24: #{tpu_custom_call.1} parent=1 // pred_region
      _
    $region25: #{tpu_custom_call.1} parent=1 // pred_fallthru
      _
    // Predicated region
    $region26: #{tpu_custom_call.1} parent=1 // pred_check
      _
    $region27: #{tpu_custom_call.1} parent=1 // pred_check_branch
      %35 = sbr.rel (0) target = $region29
    $region28: #{tpu_custom_call.1} parent=1 // pred_region
      %36 = dma.done [#allocation3], 128
    $region29: #{tpu_custom_call.1} parent=1 // pred_fallthru
      _
    %v38 = vld [vmem:[%s0] sm:$0xf]
    %v39 = vld [vmem:[%s0 + $0x4] sm:$0xf]
    %v40 = vld [vmem:[%s1] sm:$0xf]
    %v41 = vld [vmem:[%s1 + $0x4] sm:$0xf]
    %v42 = vld [vmem:[#allocation2] sm:$0xf]
    %v43 = vld [vmem:[#allocation2 + $0x4] sm:$0xf]
    %v46 = vunpack.c.l.b16 %v40
    %v47 = vunpack.c.l.b16 %v41
    %v48 = vpack.c.b16 %v47, %v46
    %v51 = vunpack.c.l.b16 %v42
    %v52 = vunpack.c.l.b16 %v43
    %v53 = vpack.c.b16 %v52, %v51
    %vm55 = vcmask 130048
    %v57 = vsel %vm55, %v48, 0
    %59 = vmatprep.subr.bf16.mxu0 0
    %60 = vmatpush1.bf16.msra.mxu0 0
    %61 = vmatprep.subr.bf16.mxu0 0
    %62 = vmatpush1.bf16.msra.mxu0 0
    %63 = vmatprep.subr.bf16.mxu0 0
    %64 = vmatpush1.bf16.msra.mxu0 0
    %65 = vmatprep.subr.bf16.mxu0 0
    %66 = vmatpush1.bf16.msra.mxu0 0
    %67 = vmatprep.subr.bf16.mxu0 0
    %68 = vmatpush1.bf16.msra.mxu0 0
    %69 = vmatprep.subr.bf16.mxu0 0
    %70 = vmatpush1.bf16.msra.mxu0 0
    %71 = vmatprep.subr.bf16.mxu0 0
    %72 = vmatpush1.bf16.msra.mxu0 0
    %73 = vmatprep.subr.bf16.mxu0 0
    %74 = vmatpush1.bf16.msra.mxu0 %v53
    %75 = vmatprep.subr.bf16.mxu0 0
    %76 = vmatpush2.bf16.msra.mxu0 0
    %77 = vmatprep.subr.bf16.mxu0 0
    %78 = vmatpush2.bf16.msra.mxu0 0
    %79 = vmatprep.subr.bf16.mxu0 0
    %80 = vmatpush2.bf16.msra.mxu0 0
    %81 = vmatprep.subr.bf16.mxu0 0
    %82 = vmatpush2.bf16.msra.mxu0 0
    %83 = vmatprep.subr.bf16.mxu0 0
    %84 = vmatpush2.bf16.msra.mxu0 0
    %85 = vmatprep.subr.bf16.mxu0 0
    %86 = vmatpush2.bf16.msra.mxu0 0
    %87 = vmatprep.subr.bf16.mxu0 0
    %88 = vmatpush2.bf16.msra.mxu0 0
    %89 = vmatprep.subr.bf16.mxu0 0
    %90 = vmatpush2.bf16.msra.mxu0 0
    %91 = vmatprep.mubr.bf16.mxu0 0
    %92 = vmatmul.mubr.bf16.gmra.mxu0 %v57
    %v93 = vpop.f32.mrf.mxu0
    %v94 = vadd.f32 0.0, %v93
    %v95 = vpop.f32.mrf.mxu0
    %v96 = vpop.f32.mrf.mxu0
    %v97 = vadd.f32 0.0, %v96
    %v98 = vpop.f32.mrf.mxu0
    %99 = vdwg.mxu0
    %v100 = vpack.c.bf16 %v97, %v94
    %v101 = vld [vmem:[%s3] sm:$0x1]
    %v103 = vlaneseq
    %v104 = vshrl.u32 %v103, 7
    %v105 = vsub.s32 0, %v104
    %v106 = vrot.slane %v101, %v105
    %v110 = vunpack.c.l.b16 %v38
    %v111 = vunpack.c.l.b16 %v39
    %v112 = vpack.c.b16 %v111, %v110
    %v114 = vsel %vm55, %v112, 0
    %116 = vmatprep.subr.bf16.mxu0 0
    %117 = vmatpush1.bf16.msra.mxu0 0
    %118 = vmatprep.subr.bf16.mxu0 0
    %119 = vmatpush1.bf16.msra.mxu0 0
    %120 = vmatprep.subr.bf16.mxu0 0
    %121 = vmatpush1.bf16.msra.mxu0 0
    %122 = vmatprep.subr.bf16.mxu0 0
    %123 = vmatpush1.bf16.msra.mxu0 0
    %124 = vmatprep.subr.bf16.mxu0 0
    %125 = vmatpush1.bf16.msra.mxu0 0
    %126 = vmatprep.subr.bf16.mxu0 0
    %127 = vmatpush1.bf16.msra.mxu0 0
    %128 = vmatprep.subr.bf16.mxu0 0
    %129 = vmatpush1.bf16.msra.mxu0 0
    %130 = vmatprep.subr.bf16.mxu0 0
    %131 = vmatpush1.bf16.msra.mxu0 %v100
    %132 = vmatprep.subr.bf16.mxu0 0
    %133 = vmatpush2.bf16.msra.mxu0 0
    %134 = vmatprep.subr.bf16.mxu0 0
    %135 = vmatpush2.bf16.msra.mxu0 0
    %136 = vmatprep.subr.bf16.mxu0 0
    %137 = vmatpush2.bf16.msra.mxu0 0
    %138 = vmatprep.subr.bf16.mxu0 0
    %139 = vmatpush2.bf16.msra.mxu0 0
    %140 = vmatprep.subr.bf16.mxu0 0
    %141 = vmatpush2.bf16.msra.mxu0 0
    %142 = vmatprep.subr.bf16.mxu0 0
    %143 = vmatpush2.bf16.msra.mxu0 0
    %144 = vmatprep.subr.bf16.mxu0 0
    %145 = vmatpush2.bf16.msra.mxu0 0
    %146 = vmatprep.subr.bf16.mxu0 0
    %147 = vmatpush2.bf16.msra.mxu0 0
    %148 = vmatprep.mubr.bf16.mxu0 0
    %149 = vmatmul.mubr.bf16.gmra.mxu0 %v114
    %v150 = vpop.f32.mrf.mxu0
    %v151 = vadd.f32 %v106, %v150
    %v152 = vpop.f32.mrf.mxu0
    %v153 = vpop.f32.mrf.mxu0
    %v154 = vadd.f32 %v106, %v153
    %v155 = vpop.f32.mrf.mxu0
    %156 = vdwg.mxu0
    %v157 = vmax.f32 %v151, 0.0
    %v158 = vmax.f32 %v154, 0.0
    %v159 = vpack.c.bf16 %v158, %v157
    %v160 = vld [vmem:[%s4] sm:$0xf]
    %v161 = vld [vmem:[%s4 + $0x4] sm:$0xf]
    %v162 = vld [vmem:[%s4 + $0x8] sm:$0xf]
    %v163 = vld [vmem:[%s4 + $0xc] sm:$0xf]
    %v168 = vunpack.c.l.b16 %v160
    %v169 = vunpack.c.l.b16 %v161
    %v170 = vunpack.c.l.b16 %v162
    %v171 = vunpack.c.l.b16 %v163
    %v172 = vpack.c.b16 %v169, %v168
    %v173 = vpack.c.b16 %v171, %v170
    %vm176 = vcmask 261120
    %v178 = vsel %vm176, %v159, 0
    %180 = vmatprep.subr.bf16.mxu0 0
    %181 = vmatpush1.bf16.msra.mxu0 0
    %182 = vmatprep.subr.bf16.mxu0 0
    %183 = vmatpush1.bf16.msra.mxu0 0
    %184 = vmatprep.subr.bf16.mxu0 0
    %185 = vmatpush1.bf16.msra.mxu0 0
    %186 = vmatprep.subr.bf16.mxu0 0
    %187 = vmatpush1.bf16.msra.mxu0 0
    %188 = vmatprep.subr.bf16.mxu0 0
    %189 = vmatpush1.bf16.msra.mxu0 0
    %190 = vmatprep.subr.bf16.mxu0 0
    %191 = vmatpush1.bf16.msra.mxu0 0
    %192 = vmatprep.subr.bf16.mxu0 0
    %193 = vmatpush1.bf16.msra.mxu0 %v173
    %194 = vmatprep.subr.bf16.mxu0 0
    %195 = vmatpush1.bf16.msra.mxu0 %v172
    %196 = vmatprep.subr.bf16.mxu0 0
    %197 = vmatpush2.bf16.msra.mxu0 0
    %198 = vmatprep.subr.bf16.mxu0 0
    %199 = vmatpush2.bf16.msra.mxu0 0
    %200 = vmatprep.subr.bf16.mxu0 0
    %201 = vmatpush2.bf16.msra.mxu0 0
    %202 = vmatprep.subr.bf16.mxu0 0
    %203 = vmatpush2.bf16.msra.mxu0 0
    %204 = vmatprep.subr.bf16.mxu0 0
    %205 = vmatpush2.bf16.msra.mxu0 0
    %206 = vmatprep.subr.bf16.mxu0 0
    %207 = vmatpush2.bf16.msra.mxu0 0
    %208 = vmatprep.subr.bf16.mxu0 0
    %209 = vmatpush2.bf16.msra.mxu0 0
    %210 = vmatprep.subr.bf16.mxu0 0
    %211 = vmatpush2.bf16.msra.mxu0 0
    %212 = vmatprep.mubr.bf16.mxu0 0
    %213 = vmatmul.mubr.bf16.gmra.mxu0 %v178
    %v214 = vpop.f32.mrf.mxu0
    %v215 = vadd.f32 0.0, %v214
    %v216 = vpop.f32.mrf.mxu0
    %v217 = vpop.f32.mrf.mxu0
    %v218 = vadd.f32 0.0, %v217
    %v219 = vpop.f32.mrf.mxu0
    %220 = vdwg.mxu0
    %v221 = vpack.c.bf16 %v218, %v215
    %v222 = vld [vmem:[%s5] sm:$0x1]
    %v224 = vlaneseq
    %v225 = vshrl.u32 %v224, 7
    %v226 = vsub.s32 0, %v225
    %v227 = vrot.slane %v222, %v226
    %229 = vmatprep.subr.bf16.mxu0 0
    %230 = vmatpush1.bf16.msra.mxu0 0
    %231 = vmatprep.subr.bf16.mxu0 0
    %232 = vmatpush1.bf16.msra.mxu0 0
    %233 = vmatprep.subr.bf16.mxu0 0
    %234 = vmatpush1.bf16.msra.mxu0 0
    %235 = vmatprep.subr.bf16.mxu0 0
    %236 = vmatpush1.bf16.msra.mxu0 0
    %237 = vmatprep.subr.bf16.mxu0 0
    %238 = vmatpush1.bf16.msra.mxu0 0
    %239 = vmatprep.subr.bf16.mxu0 0
    %240 = vmatpush1.bf16.msra.mxu0 0
    %241 = vmatprep.subr.bf16.mxu0 0
    %242 = vmatpush1.bf16.msra.mxu0 0
    %243 = vmatprep.subr.bf16.mxu0 0
    %244 = vmatpush1.bf16.msra.mxu0 %v221
    %245 = vmatprep.subr.bf16.mxu0 0
    %246 = vmatpush2.bf16.msra.mxu0 0
    %247 = vmatprep.subr.bf16.mxu0 0
    %248 = vmatpush2.bf16.msra.mxu0 0
    %249 = vmatprep.subr.bf16.mxu0 0
    %250 = vmatpush2.bf16.msra.mxu0 0
    %251 = vmatprep.subr.bf16.mxu0 0
    %252 = vmatpush2.bf16.msra.mxu0 0
    %253 = vmatprep.subr.bf16.mxu0 0
    %254 = vmatpush2.bf16.msra.mxu0 0
    %255 = vmatprep.subr.bf16.mxu0 0
    %256 = vmatpush2.bf16.msra.mxu0 0
    %257 = vmatprep.subr.bf16.mxu0 0
    %258 = vmatpush2.bf16.msra.mxu0 0
    %259 = vmatprep.subr.bf16.mxu0 0
    %260 = vmatpush2.bf16.msra.mxu0 0
    %261 = vmatprep.mubr.bf16.mxu0 0
    %262 = vmatmul.mubr.bf16.gmra.mxu0 %v114
    %v263 = vpop.f32.mrf.mxu0
    %v264 = vadd.f32 %v227, %v263
    %v265 = vpop.f32.mrf.mxu0
    %v266 = vpop.f32.mrf.mxu0
    %v267 = vadd.f32 %v227, %v266
    %v268 = vpop.f32.mrf.mxu0
    %269 = vdwg.mxu0
    %vm270 = vcmask 31744
    %271 = vst.msk [vmem:[%s6] sm:$0xff] %vm270, %v264
    %272 = vst.msk [vmem:[%s6 + $0x8] sm:$0xff] %vm270, %v267
    // Predicated region
    $region30: #{tpu_custom_call.1} parent=1 // pred_check
      _
    $region31: #{tpu_custom_call.1} parent=1 // pred_check_branch
      %274 = sbr.rel (0) target = $region33
    $region32: #{tpu_custom_call.1} parent=1 // pred_region
      _
    $region33: #{tpu_custom_call.1} parent=1 // pred_fallthru
      _
    // Predicated region
    $region34: #{tpu_custom_call.1} parent=1 // pred_check
      _
    $region35: #{tpu_custom_call.1} parent=1 // pred_check_branch
      %276 = sbr.rel (0) target = $region37
    $region36: #{tpu_custom_call.1} parent=1 // pred_region
      _
    $region37: #{tpu_custom_call.1} parent=1 // pred_fallthru
      _
    %277 = vsyncpa [#allocation3], 1

</llo_original>
